<compile_context>
chip_gen: v7x
topology: tpu7x:2x2x1
jax: 0.10.0
libtpu: 0.0.40
codegen_flags: <defaults>
</compile_context>

<pallas_src>
import functools

import jax
import jax.numpy as jnp
from jax import lax
from jax.experimental import pallas as pl
from jax.experimental.pallas import tpu as pltpu


def _fused_rnn_kernel(
    story_ref,    # [B, S]   int32 (SMEM) story word indices
    quest_ref,    # [B, Q]   int32 (SMEM) question word indices
    proj_ref,     # [V2p, Hp] bf16 (VMEM) block-diag( emb_s @ Wih_s , emb_q @ Wih_q )
    b_rnn_ref,    # [1, Hp]  f32  (VMEM) concat(b_ih_s + b_hh_s , b_ih_q + b_hh_q), zero-padded
    whh_ref,      # [Hp, Hp] bf16 (VMEM) block-diag( Whh_s , Whh_q ), transposed layout
    wlin_ref,     # [Hp, Vp] bf16 (VMEM) Linear weight (transposed), vocab padded
    b_lin_ref,    # [1, Vp]  f32  (VMEM) Linear bias, -1e30 on padded lanes
    out_ref,      # [B, Vp]  f32  (VMEM) log-softmax output (lane-dense)
    *,
    story_hidden,
    vocab,
):
    B, S = story_ref.shape
    _, Q = quest_ref.shape
    T = max(S, Q)
    V2p, Hp = proj_ref.shape
    Hs = story_hidden
    V = vocab

    # Load every weight exactly once; resident across the unrolled loop.
    proj = proj_ref[...]        # bf16 [V2p, Hp]
    b_rnn = b_rnn_ref[...]      # f32  [1, Hp]
    whh = whh_ref[...]          # bf16 [Hp, Hp]
    wlin = wlin_ref[...]        # bf16 [Hp, Vp]
    b_lin = b_lin_ref[...]      # f32  [1, Vp]

    # ------------------------------------------------------------------
    # Prologue: ALL input projections (every t, every batch row) in ONE
    # bf16 matmul.  Row r = t*B + b is hot at column story[b,t] and/or at
    # column V + quest[b,t]; against the block-diag projection table this
    # reproduces  emb[idx_t] @ W_ih^T  for both RNNs at once.
    # ------------------------------------------------------------------
    n_rows = T * B
    Rp = ((n_rows + 7) // 8) * 8                       # sublane-aligned rows

    row_id = lax.broadcasted_iota(jnp.int32, (Rp, 1), 0)
    col = lax.broadcasted_iota(jnp.int32, (Rp, V2p), 1)

    story_col = jnp.full((Rp, 1), -1, jnp.int32)       # -1 => no hot column
    quest_col = jnp.full((Rp, 1), -1, jnp.int32)
    for t in range(T):
        for b in range(B):
            r = t * B + b
            if t < S:
                story_col = jnp.where(row_id == r, story_ref[b, t], story_col)
            if t < Q:
                quest_col = jnp.where(row_id == r, quest_ref[b, t] + V, quest_col)

    onehot = ((col == story_col) | (col == quest_col)).astype(jnp.bfloat16)
    pre = jnp.dot(onehot, proj, preferred_element_type=jnp.float32) + b_rnn  # [Rp, Hp]
    # Pre-extract per-step slices; independent of h => off the serial chain.
    pre_t = [pre[t * B:(t + 1) * B, :] for t in range(T)]

    # ------------------------------------------------------------------
    # Freeze masks hoisted out of the recurrence.
    # ------------------------------------------------------------------
    lane_h = lax.broadcasted_iota(jnp.int32, (1, Hp), 1)
    story_active = lane_h < Hs       # quest finished: update story half only
    quest_active = lane_h >= Hs      # story finished: update quest half (+ zero pad)

    # ------------------------------------------------------------------
    # Fused block-diagonal Elman recurrence, fully unrolled.
    # whh is the only RHS in this loop -> stays staged in the MXU.
    # ------------------------------------------------------------------
    h = jnp.zeros((B, Hp), jnp.float32)
    for t in range(T):
        h_new = jnp.tanh(
            jnp.dot(h.astype(jnp.bfloat16), whh,
                    preferred_element_type=jnp.float32) + pre_t[t])
        if t < S and t < Q:
            h = h_new
        elif t < S:
            h = jnp.where(story_active, h_new, h)   # freeze quest half
        else:
            h = jnp.where(quest_active, h_new, h)   # freeze story half

    # ------------------------------------------------------------------
    # Linear( concat(h_story, h_quest) ) + LogSoftmax over the padded vocab.
    # ------------------------------------------------------------------
    z = jnp.dot(h.astype(jnp.bfloat16), wlin,
                preferred_element_type=jnp.float32) + b_lin        # [B, Vp]
    m = jnp.max(z, axis=-1, keepdims=True)
    lse = jnp.log(jnp.sum(jnp.exp(z - m), axis=-1, keepdims=True)) + m
    out_ref[...] = z - lse


def pack_params(params):
    """One-time parameter packing for the fused kernel (pure jnp, off hot path)."""
    f32, bf16 = jnp.float32, jnp.bfloat16
    Hs = params["whh_s"].shape[0]
    Hq = params["whh_q"].shape[0]
    H = Hs + Hq
    V = params["emb_story"].shape[0]
    Hp = ((H + 127) // 128) * 128        # lane-dense hidden (zero-padded)
    Vp = ((V + 127) // 128) * 128        # lane-dense vocab
    V2p = ((2 * V + 127) // 128) * 128   # lane-dense one-hot width

    # Fold the embedding lookup into the input projection:  onehot @ (E @ Wih)
    proj_s = params["emb_story"] @ params["wih_s"]            # [V, Hs]
    proj_q = params["emb_quest"] @ params["wih_q"]            # [V, Hq]
    proj = jnp.zeros((V2p, Hp), f32)
    proj = proj.at[:V, :Hs].set(proj_s)
    proj = proj.at[V:2 * V, Hs:H].set(proj_q)

    whh = jnp.zeros((Hp, Hp), f32)
    whh = whh.at[:Hs, :Hs].set(params["whh_s"])
    whh = whh.at[Hs:H, Hs:H].set(params["whh_q"])

    b_rnn = jnp.zeros((1, Hp), f32)
    b_rnn = b_rnn.at[:, :H].set(
        jnp.concatenate([params["b_s"], params["b_q"]], axis=-1))

    wlin = jnp.zeros((Hp, Vp), f32)
    wlin = wlin.at[:Hs, :V].set(params["wlin_s"])
    wlin = wlin.at[Hs:H, :V].set(params["wlin_q"])
    b_lin = jnp.full((1, Vp), -1e30, f32).at[:, :V].set(params["b_lin"][0])

    return {
        "proj": proj.astype(bf16),          # bf16 (exact 0/1 LHS, f32 accumulate)
        "b_rnn": b_rnn,                     # f32
        "whh": whh.astype(bf16),            # bf16
        "wlin": wlin.astype(bf16),          # bf16
        "b_lin": b_lin,                     # f32 (padded lanes = -1e30)
        "story_hidden": Hs,                 # static
        "vocab": V,                         # static
    }


def my_model_forward_batched(story_idx, quest_idx, packed):
    """story_idx: [B,S] int32, quest_idx: [B,Q] int32 -> [B, vocab] f32 log-probs."""
    B = story_idx.shape[0]
    Vp = packed["b_lin"].shape[-1]
    smem = pl.BlockSpec(memory_space=pltpu.MemorySpace.SMEM)
    vmem = pl.BlockSpec(memory_space=pltpu.MemorySpace.VMEM)
    kernel = functools.partial(_fused_rnn_kernel,
                               story_hidden=packed["story_hidden"],
                               vocab=packed["vocab"])
    out = pl.pallas_call(
        kernel,
        out_shape=jax.ShapeDtypeStruct((B, Vp), jnp.float32),
        in_specs=[smem, smem, vmem, vmem, vmem, vmem, vmem],
        out_specs=vmem,
    )(
        story_idx.astype(jnp.int32), quest_idx.astype(jnp.int32),
        packed["proj"], packed["b_rnn"], packed["whh"],
        packed["wlin"], packed["b_lin"],
    )
    return out[:, :packed["vocab"]]


def my_model_forward(story_idx, quest_idx, packed):
    """Single (story, quest) pair — exact MyModel.forward semantics. -> [vocab]."""
    out = my_model_forward_batched(story_idx[None, :], quest_idx[None, :], packed)
    return out[0]


def init_params(key, vocab_size, embedding_size, story_hidden, quest_hidden):
    # NOTE: W_ih / W_hh / W_lin are stored TRANSPOSED relative to PyTorch
    # (x @ W form); transpose real PyTorch checkpoints before pack_params.
    ks = jax.random.split(key, 13)
    f32 = jnp.float32

    def u(k, shape, scale):
        return jax.random.uniform(k, shape, f32, -scale, scale)

    s_s = 1.0 / jnp.sqrt(story_hidden)
    s_q = 1.0 / jnp.sqrt(quest_hidden)
    s_l = 1.0 / jnp.sqrt(story_hidden + quest_hidden)

    return {
        # Embeddings (PyTorch: N(0,1))
        "emb_story": jax.random.normal(ks[0], (vocab_size, embedding_size), f32),
        "emb_quest": jax.random.normal(ks[1], (vocab_size, embedding_size), f32),
        # Story RNN
        "wih_s": u(ks[2], (embedding_size, story_hidden), s_s),
        "whh_s": u(ks[3], (story_hidden, story_hidden), s_s),
        "b_s": (u(ks[4], (1, story_hidden), s_s)
                + u(ks[5], (1, story_hidden), s_s)),   # b_ih + b_hh
        # Quest RNN
        "wih_q": u(ks[6], (embedding_size, quest_hidden), s_q),
        "whh_q": u(ks[7], (quest_hidden, quest_hidden), s_q),
        "b_q": (u(ks[8], (1, quest_hidden), s_q)
                + u(ks[9], (1, quest_hidden), s_q)),
        # Linear(Hs+Hq -> vocab), split into story-half / quest-half rows
        "wlin_s": u(ks[10], (story_hidden, vocab_size), s_l),
        "wlin_q": u(ks[11], (quest_hidden, vocab_size), s_l),
        "b_lin": u(ks[12], (1, vocab_size), s_l),
    }


def reference_forward(story_idx, quest_idx, params):
    """Pure-JAX f32 reference of MyModel.forward (single pair)."""
    def rnn(emb, idx, wih, whh, b):
        h = jnp.zeros((whh.shape[0],), jnp.float32)
        for t in range(idx.shape[0]):
            h = jnp.tanh(emb[idx[t]] @ wih + h @ whh + b[0])
        return h

    hs = rnn(params["emb_story"], story_idx, params["wih_s"], params["whh_s"], params["b_s"])
    hq = rnn(params["emb_quest"], quest_idx, params["wih_q"], params["whh_q"], params["b_q"])
    h = jnp.concatenate([hs, hq])
    w = jnp.concatenate([params["wlin_s"], params["wlin_q"]], axis=0)
    z = h @ w + params["b_lin"][0]
    return jax.nn.log_softmax(z)


if __name__ == "__main__":
    vocab_size = 32
    embedding_size = 16
    story_hidden = 32
    quest_hidden = 32
    S, Q, B = 8, 6, 2

    key = jax.random.PRNGKey(0)
    k_params, k_story, k_quest = jax.random.split(key, 3)

    params = init_params(k_params, vocab_size, embedding_size,
                         story_hidden, quest_hidden)
    packed = pack_params(params)

    story = jax.random.randint(k_story, (B, S), 0, vocab_size, dtype=jnp.int32)
    quest = jax.random.randint(k_quest, (B, Q), 0, vocab_size, dtype=jnp.int32)

    # Batched path (perf lever) and single-pair path (module semantics).
    out_b = jax.block_until_ready(my_model_forward_batched(story, quest, packed))
    out_0 = jax.block_until_ready(my_model_forward(story[0], quest[0], packed))

    assert out_b.shape == (B, vocab_size)
    assert out_0.shape == (vocab_size,)
    # log-softmax sanity: probabilities sum to ~1 (padded lanes contribute 0)
    assert bool(jnp.all(jnp.abs(jnp.sum(jnp.exp(out_b), axis=-1) - 1.0) < 1e-3))
    # batched row 0 matches the single-pair call
    assert float(jnp.max(jnp.abs(out_b[0] - out_0))) < 1e-4
    # matches the pure-JAX f32 reference (bf16 weights -> loose tolerance)
    for b in range(B):
        ref = reference_forward(story[b], quest[b], params)
        assert float(jnp.max(jnp.abs(out_b[b] - ref))) < 1e-1

    print("KERNEL_OK")
</pallas_src>

<mosaic_0001>
module attributes {stable_mosaic.version = 11 : i64} {
  func.func @_fused_rnn_kernel(%arg0: memref<2x8xi32, #tpu.memory_space<smem>>, %arg1: memref<2x6xi32, #tpu.memory_space<smem>>, %arg2: memref<128x128xbf16, #tpu.memory_space<vmem>>, %arg3: memref<1x128xf32, #tpu.memory_space<vmem>>, %arg4: memref<128x128xbf16, #tpu.memory_space<vmem>>, %arg5: memref<128x128xbf16, #tpu.memory_space<vmem>>, %arg6: memref<1x128xf32, #tpu.memory_space<vmem>>, %arg7: memref<2x128xf32, #tpu.memory_space<vmem>>) attributes {dimension_semantics = [], scalar_prefetch = 0 : i64, scratch_operands = 0 : i64, tpu.core_type = #tpu.core_type<tc>} {
    %c0 = arith.constant 0 : index
    %c0_0 = arith.constant 0 : index
    %0 = vector.load %arg2[%c0, %c0_0] : memref<128x128xbf16, #tpu.memory_space<vmem>>, vector<128x128xbf16>
    %c0_1 = arith.constant 0 : index
    %c0_2 = arith.constant 0 : index
    %1 = vector.load %arg3[%c0_1, %c0_2] : memref<1x128xf32, #tpu.memory_space<vmem>>, vector<1x128xf32>
    %c0_3 = arith.constant 0 : index
    %c0_4 = arith.constant 0 : index
    %2 = vector.load %arg4[%c0_3, %c0_4] : memref<128x128xbf16, #tpu.memory_space<vmem>>, vector<128x128xbf16>
    %c0_5 = arith.constant 0 : index
    %c0_6 = arith.constant 0 : index
    %3 = vector.load %arg5[%c0_5, %c0_6] : memref<128x128xbf16, #tpu.memory_space<vmem>>, vector<128x128xbf16>
    %c0_7 = arith.constant 0 : index
    %c0_8 = arith.constant 0 : index
    %4 = vector.load %arg6[%c0_7, %c0_8] : memref<1x128xf32, #tpu.memory_space<vmem>>, vector<1x128xf32>
    %5 = tpu.iota {dimensions = array<i32: 0>} : vector<16x1xi32>
    %6 = tpu.iota {dimensions = array<i32: 1>} : vector<16x128xi32>
    %c-1_i32 = arith.constant -1 : i32
    %7 = vector.broadcast %c-1_i32 : i32 to vector<16x1xi32>
    %c-1_i32_9 = arith.constant -1 : i32
    %8 = vector.broadcast %c-1_i32_9 : i32 to vector<16x1xi32>
    %c0_i32 = arith.constant 0 : i32
    %9 = vector.broadcast %c0_i32 : i32 to vector<16x1xi32>
    %10 = arith.cmpi eq, %5, %9 : vector<16x1xi32>
    %c0_10 = arith.constant 0 : index
    %c0_11 = arith.constant 0 : index
    %11 = memref.load %arg0[%c0_10, %c0_11] : memref<2x8xi32, #tpu.memory_space<smem>>
    %12 = vector.broadcast %11 : i32 to vector<16x1xi32>
    %13 = arith.select %10, %12, %7 : vector<16x1xi1>, vector<16x1xi32>
    %c0_i32_12 = arith.constant 0 : i32
    %14 = vector.broadcast %c0_i32_12 : i32 to vector<16x1xi32>
    %15 = arith.cmpi eq, %5, %14 : vector<16x1xi32>
    %c0_13 = arith.constant 0 : index
    %c0_14 = arith.constant 0 : index
    %16 = memref.load %arg1[%c0_13, %c0_14] : memref<2x6xi32, #tpu.memory_space<smem>>
    %c32_i32 = arith.constant 32 : i32
    %17 = arith.addi %16, %c32_i32 : i32
    %18 = vector.broadcast %17 : i32 to vector<16x1xi32>
    %19 = arith.select %15, %18, %8 : vector<16x1xi1>, vector<16x1xi32>
    %c1_i32 = arith.constant 1 : i32
    %20 = vector.broadcast %c1_i32 : i32 to vector<16x1xi32>
    %21 = arith.cmpi eq, %5, %20 : vector<16x1xi32>
    %c1 = arith.constant 1 : index
    %c0_15 = arith.constant 0 : index
    %22 = memref.load %arg0[%c1, %c0_15] : memref<2x8xi32, #tpu.memory_space<smem>>
    %23 = vector.broadcast %22 : i32 to vector<16x1xi32>
    %24 = arith.select %21, %23, %13 : vector<16x1xi1>, vector<16x1xi32>
    %c1_i32_16 = arith.constant 1 : i32
    %25 = vector.broadcast %c1_i32_16 : i32 to vector<16x1xi32>
    %26 = arith.cmpi eq, %5, %25 : vector<16x1xi32>
    %c1_17 = arith.constant 1 : index
    %c0_18 = arith.constant 0 : index
    %27 = memref.load %arg1[%c1_17, %c0_18] : memref<2x6xi32, #tpu.memory_space<smem>>
    %c32_i32_19 = arith.constant 32 : i32
    %28 = arith.addi %27, %c32_i32_19 : i32
    %29 = vector.broadcast %28 : i32 to vector<16x1xi32>
    %30 = arith.select %26, %29, %19 : vector<16x1xi1>, vector<16x1xi32>
    %c2_i32 = arith.constant 2 : i32
    %31 = vector.broadcast %c2_i32 : i32 to vector<16x1xi32>
    %32 = arith.cmpi eq, %5, %31 : vector<16x1xi32>
    %c0_20 = arith.constant 0 : index
    %c1_21 = arith.constant 1 : index
    %33 = memref.load %arg0[%c0_20, %c1_21] : memref<2x8xi32, #tpu.memory_space<smem>>
    %34 = vector.broadcast %33 : i32 to vector<16x1xi32>
    %35 = arith.select %32, %34, %24 : vector<16x1xi1>, vector<16x1xi32>
    %c2_i32_22 = arith.constant 2 : i32
    %36 = vector.broadcast %c2_i32_22 : i32 to vector<16x1xi32>
    %37 = arith.cmpi eq, %5, %36 : vector<16x1xi32>
    %c0_23 = arith.constant 0 : index
    %c1_24 = arith.constant 1 : index
    %38 = memref.load %arg1[%c0_23, %c1_24] : memref<2x6xi32, #tpu.memory_space<smem>>
    %c32_i32_25 = arith.constant 32 : i32
    %39 = arith.addi %38, %c32_i32_25 : i32
    %40 = vector.broadcast %39 : i32 to vector<16x1xi32>
    %41 = arith.select %37, %40, %30 : vector<16x1xi1>, vector<16x1xi32>
    %c3_i32 = arith.constant 3 : i32
    %42 = vector.broadcast %c3_i32 : i32 to vector<16x1xi32>
    %43 = arith.cmpi eq, %5, %42 : vector<16x1xi32>
    %c1_26 = arith.constant 1 : index
    %c1_27 = arith.constant 1 : index
    %44 = memref.load %arg0[%c1_26, %c1_27] : memref<2x8xi32, #tpu.memory_space<smem>>
    %45 = vector.broadcast %44 : i32 to vector<16x1xi32>
    %46 = arith.select %43, %45, %35 : vector<16x1xi1>, vector<16x1xi32>
    %c3_i32_28 = arith.constant 3 : i32
    %47 = vector.broadcast %c3_i32_28 : i32 to vector<16x1xi32>
    %48 = arith.cmpi eq, %5, %47 : vector<16x1xi32>
    %c1_29 = arith.constant 1 : index
    %c1_30 = arith.constant 1 : index
    %49 = memref.load %arg1[%c1_29, %c1_30] : memref<2x6xi32, #tpu.memory_space<smem>>
    %c32_i32_31 = arith.constant 32 : i32
    %50 = arith.addi %49, %c32_i32_31 : i32
    %51 = vector.broadcast %50 : i32 to vector<16x1xi32>
    %52 = arith.select %48, %51, %41 : vector<16x1xi1>, vector<16x1xi32>
    %c4_i32 = arith.constant 4 : i32
    %53 = vector.broadcast %c4_i32 : i32 to vector<16x1xi32>
    %54 = arith.cmpi eq, %5, %53 : vector<16x1xi32>
    %c0_32 = arith.constant 0 : index
    %c2 = arith.constant 2 : index
    %55 = memref.load %arg0[%c0_32, %c2] : memref<2x8xi32, #tpu.memory_space<smem>>
    %56 = vector.broadcast %55 : i32 to vector<16x1xi32>
    %57 = arith.select %54, %56, %46 : vector<16x1xi1>, vector<16x1xi32>
    %c4_i32_33 = arith.constant 4 : i32
    %58 = vector.broadcast %c4_i32_33 : i32 to vector<16x1xi32>
    %59 = arith.cmpi eq, %5, %58 : vector<16x1xi32>
    %c0_34 = arith.constant 0 : index
    %c2_35 = arith.constant 2 : index
    %60 = memref.load %arg1[%c0_34, %c2_35] : memref<2x6xi32, #tpu.memory_space<smem>>
    %c32_i32_36 = arith.constant 32 : i32
    %61 = arith.addi %60, %c32_i32_36 : i32
    %62 = vector.broadcast %61 : i32 to vector<16x1xi32>
    %63 = arith.select %59, %62, %52 : vector<16x1xi1>, vector<16x1xi32>
    %c5_i32 = arith.constant 5 : i32
    %64 = vector.broadcast %c5_i32 : i32 to vector<16x1xi32>
    %65 = arith.cmpi eq, %5, %64 : vector<16x1xi32>
    %c1_37 = arith.constant 1 : index
    %c2_38 = arith.constant 2 : index
    %66 = memref.load %arg0[%c1_37, %c2_38] : memref<2x8xi32, #tpu.memory_space<smem>>
    %67 = vector.broadcast %66 : i32 to vector<16x1xi32>
    %68 = arith.select %65, %67, %57 : vector<16x1xi1>, vector<16x1xi32>
    %c5_i32_39 = arith.constant 5 : i32
    %69 = vector.broadcast %c5_i32_39 : i32 to vector<16x1xi32>
    %70 = arith.cmpi eq, %5, %69 : vector<16x1xi32>
    %c1_40 = arith.constant 1 : index
    %c2_41 = arith.constant 2 : index
    %71 = memref.load %arg1[%c1_40, %c2_41] : memref<2x6xi32, #tpu.memory_space<smem>>
    %c32_i32_42 = arith.constant 32 : i32
    %72 = arith.addi %71, %c32_i32_42 : i32
    %73 = vector.broadcast %72 : i32 to vector<16x1xi32>
    %74 = arith.select %70, %73, %63 : vector<16x1xi1>, vector<16x1xi32>
    %c6_i32 = arith.constant 6 : i32
    %75 = vector.broadcast %c6_i32 : i32 to vector<16x1xi32>
    %76 = arith.cmpi eq, %5, %75 : vector<16x1xi32>
    %c0_43 = arith.constant 0 : index
    %c3 = arith.constant 3 : index
    %77 = memref.load %arg0[%c0_43, %c3] : memref<2x8xi32, #tpu.memory_space<smem>>
    %78 = vector.broadcast %77 : i32 to vector<16x1xi32>
    %79 = arith.select %76, %78, %68 : vector<16x1xi1>, vector<16x1xi32>
    %c6_i32_44 = arith.constant 6 : i32
    %80 = vector.broadcast %c6_i32_44 : i32 to vector<16x1xi32>
    %81 = arith.cmpi eq, %5, %80 : vector<16x1xi32>
    %c0_45 = arith.constant 0 : index
    %c3_46 = arith.constant 3 : index
    %82 = memref.load %arg1[%c0_45, %c3_46] : memref<2x6xi32, #tpu.memory_space<smem>>
    %c32_i32_47 = arith.constant 32 : i32
    %83 = arith.addi %82, %c32_i32_47 : i32
    %84 = vector.broadcast %83 : i32 to vector<16x1xi32>
    %85 = arith.select %81, %84, %74 : vector<16x1xi1>, vector<16x1xi32>
    %c7_i32 = arith.constant 7 : i32
    %86 = vector.broadcast %c7_i32 : i32 to vector<16x1xi32>
    %87 = arith.cmpi eq, %5, %86 : vector<16x1xi32>
    %c1_48 = arith.constant 1 : index
    %c3_49 = arith.constant 3 : index
    %88 = memref.load %arg0[%c1_48, %c3_49] : memref<2x8xi32, #tpu.memory_space<smem>>
    %89 = vector.broadcast %88 : i32 to vector<16x1xi32>
    %90 = arith.select %87, %89, %79 : vector<16x1xi1>, vector<16x1xi32>
    %c7_i32_50 = arith.constant 7 : i32
    %91 = vector.broadcast %c7_i32_50 : i32 to vector<16x1xi32>
    %92 = arith.cmpi eq, %5, %91 : vector<16x1xi32>
    %c1_51 = arith.constant 1 : index
    %c3_52 = arith.constant 3 : index
    %93 = memref.load %arg1[%c1_51, %c3_52] : memref<2x6xi32, #tpu.memory_space<smem>>
    %c32_i32_53 = arith.constant 32 : i32
    %94 = arith.addi %93, %c32_i32_53 : i32
    %95 = vector.broadcast %94 : i32 to vector<16x1xi32>
    %96 = arith.select %92, %95, %85 : vector<16x1xi1>, vector<16x1xi32>
    %c8_i32 = arith.constant 8 : i32
    %97 = vector.broadcast %c8_i32 : i32 to vector<16x1xi32>
    %98 = arith.cmpi eq, %5, %97 : vector<16x1xi32>
    %c0_54 = arith.constant 0 : index
    %c4 = arith.constant 4 : index
    %99 = memref.load %arg0[%c0_54, %c4] : memref<2x8xi32, #tpu.memory_space<smem>>
    %100 = vector.broadcast %99 : i32 to vector<16x1xi32>
    %101 = arith.select %98, %100, %90 : vector<16x1xi1>, vector<16x1xi32>
    %c8_i32_55 = arith.constant 8 : i32
    %102 = vector.broadcast %c8_i32_55 : i32 to vector<16x1xi32>
    %103 = arith.cmpi eq, %5, %102 : vector<16x1xi32>
    %c0_56 = arith.constant 0 : index
    %c4_57 = arith.constant 4 : index
    %104 = memref.load %arg1[%c0_56, %c4_57] : memref<2x6xi32, #tpu.memory_space<smem>>
    %c32_i32_58 = arith.constant 32 : i32
    %105 = arith.addi %104, %c32_i32_58 : i32
    %106 = vector.broadcast %105 : i32 to vector<16x1xi32>
    %107 = arith.select %103, %106, %96 : vector<16x1xi1>, vector<16x1xi32>
    %c9_i32 = arith.constant 9 : i32
    %108 = vector.broadcast %c9_i32 : i32 to vector<16x1xi32>
    %109 = arith.cmpi eq, %5, %108 : vector<16x1xi32>
    %c1_59 = arith.constant 1 : index
    %c4_60 = arith.constant 4 : index
    %110 = memref.load %arg0[%c1_59, %c4_60] : memref<2x8xi32, #tpu.memory_space<smem>>
    %111 = vector.broadcast %110 : i32 to vector<16x1xi32>
    %112 = arith.select %109, %111, %101 : vector<16x1xi1>, vector<16x1xi32>
    %c9_i32_61 = arith.constant 9 : i32
    %113 = vector.broadcast %c9_i32_61 : i32 to vector<16x1xi32>
    %114 = arith.cmpi eq, %5, %113 : vector<16x1xi32>
    %c1_62 = arith.constant 1 : index
    %c4_63 = arith.constant 4 : index
    %115 = memref.load %arg1[%c1_62, %c4_63] : memref<2x6xi32, #tpu.memory_space<smem>>
    %c32_i32_64 = arith.constant 32 : i32
    %116 = arith.addi %115, %c32_i32_64 : i32
    %117 = vector.broadcast %116 : i32 to vector<16x1xi32>
    %118 = arith.select %114, %117, %107 : vector<16x1xi1>, vector<16x1xi32>
    %c10_i32 = arith.constant 10 : i32
    %119 = vector.broadcast %c10_i32 : i32 to vector<16x1xi32>
    %120 = arith.cmpi eq, %5, %119 : vector<16x1xi32>
    %c0_65 = arith.constant 0 : index
    %c5 = arith.constant 5 : index
    %121 = memref.load %arg0[%c0_65, %c5] : memref<2x8xi32, #tpu.memory_space<smem>>
    %122 = vector.broadcast %121 : i32 to vector<16x1xi32>
    %123 = arith.select %120, %122, %112 : vector<16x1xi1>, vector<16x1xi32>
    %c10_i32_66 = arith.constant 10 : i32
    %124 = vector.broadcast %c10_i32_66 : i32 to vector<16x1xi32>
    %125 = arith.cmpi eq, %5, %124 : vector<16x1xi32>
    %c0_67 = arith.constant 0 : index
    %c5_68 = arith.constant 5 : index
    %126 = memref.load %arg1[%c0_67, %c5_68] : memref<2x6xi32, #tpu.memory_space<smem>>
    %c32_i32_69 = arith.constant 32 : i32
    %127 = arith.addi %126, %c32_i32_69 : i32
    %128 = vector.broadcast %127 : i32 to vector<16x1xi32>
    %129 = arith.select %125, %128, %118 : vector<16x1xi1>, vector<16x1xi32>
    %c11_i32 = arith.constant 11 : i32
    %130 = vector.broadcast %c11_i32 : i32 to vector<16x1xi32>
    %131 = arith.cmpi eq, %5, %130 : vector<16x1xi32>
    %c1_70 = arith.constant 1 : index
    %c5_71 = arith.constant 5 : index
    %132 = memref.load %arg0[%c1_70, %c5_71] : memref<2x8xi32, #tpu.memory_space<smem>>
    %133 = vector.broadcast %132 : i32 to vector<16x1xi32>
    %134 = arith.select %131, %133, %123 : vector<16x1xi1>, vector<16x1xi32>
    %c11_i32_72 = arith.constant 11 : i32
    %135 = vector.broadcast %c11_i32_72 : i32 to vector<16x1xi32>
    %136 = arith.cmpi eq, %5, %135 : vector<16x1xi32>
    %c1_73 = arith.constant 1 : index
    %c5_74 = arith.constant 5 : index
    %137 = memref.load %arg1[%c1_73, %c5_74] : memref<2x6xi32, #tpu.memory_space<smem>>
    %c32_i32_75 = arith.constant 32 : i32
    %138 = arith.addi %137, %c32_i32_75 : i32
    %139 = vector.broadcast %138 : i32 to vector<16x1xi32>
    %140 = arith.select %136, %139, %129 : vector<16x1xi1>, vector<16x1xi32>
    %c12_i32 = arith.constant 12 : i32
    %141 = vector.broadcast %c12_i32 : i32 to vector<16x1xi32>
    %142 = arith.cmpi eq, %5, %141 : vector<16x1xi32>
    %c0_76 = arith.constant 0 : index
    %c6 = arith.constant 6 : index
    %143 = memref.load %arg0[%c0_76, %c6] : memref<2x8xi32, #tpu.memory_space<smem>>
    %144 = vector.broadcast %143 : i32 to vector<16x1xi32>
    %145 = arith.select %142, %144, %134 : vector<16x1xi1>, vector<16x1xi32>
    %c13_i32 = arith.constant 13 : i32
    %146 = vector.broadcast %c13_i32 : i32 to vector<16x1xi32>
    %147 = arith.cmpi eq, %5, %146 : vector<16x1xi32>
    %c1_77 = arith.constant 1 : index
    %c6_78 = arith.constant 6 : index
    %148 = memref.load %arg0[%c1_77, %c6_78] : memref<2x8xi32, #tpu.memory_space<smem>>
    %149 = vector.broadcast %148 : i32 to vector<16x1xi32>
    %150 = arith.select %147, %149, %145 : vector<16x1xi1>, vector<16x1xi32>
    %c14_i32 = arith.constant 14 : i32
    %151 = vector.broadcast %c14_i32 : i32 to vector<16x1xi32>
    %152 = arith.cmpi eq, %5, %151 : vector<16x1xi32>
    %c0_79 = arith.constant 0 : index
    %c7 = arith.constant 7 : index
    %153 = memref.load %arg0[%c0_79, %c7] : memref<2x8xi32, #tpu.memory_space<smem>>
    %154 = vector.broadcast %153 : i32 to vector<16x1xi32>
    %155 = arith.select %152, %154, %150 : vector<16x1xi1>, vector<16x1xi32>
    %c15_i32 = arith.constant 15 : i32
    %156 = vector.broadcast %c15_i32 : i32 to vector<16x1xi32>
    %157 = arith.cmpi eq, %5, %156 : vector<16x1xi32>
    %c1_80 = arith.constant 1 : index
    %c7_81 = arith.constant 7 : index
    %158 = memref.load %arg0[%c1_80, %c7_81] : memref<2x8xi32, #tpu.memory_space<smem>>
    %159 = vector.broadcast %158 : i32 to vector<16x1xi32>
    %160 = arith.select %157, %159, %155 : vector<16x1xi1>, vector<16x1xi32>
    %161 = vector.broadcast %160 : vector<16x1xi32> to vector<16x128xi32>
    %162 = arith.cmpi eq, %6, %161 : vector<16x128xi32>
    %163 = vector.broadcast %140 : vector<16x1xi32> to vector<16x128xi32>
    %164 = arith.cmpi eq, %6, %163 : vector<16x128xi32>
    %165 = arith.ori %162, %164 : vector<16x128xi1>
    %166 = arith.extui %165 : vector<16x128xi1> to vector<16x128xi32>
    %167 = arith.sitofp %166 : vector<16x128xi32> to vector<16x128xf32>
    %168 = arith.truncf %167 : vector<16x128xf32> to vector<16x128xbf16>
    %cst = arith.constant dense<0.000000e+00> : vector<16x128xf32>
    %169 = tpu.matmul %168, %0, %cst {dimension_numbers = #tpu.dot_dimension_numbers<[1], [0], [0], [1], [0, 0, 1, 1], [], []>} : vector<16x128xbf16>, vector<128x128xbf16>, vector<16x128xf32> -> vector<16x128xf32>
    %170 = vector.broadcast %1 : vector<1x128xf32> to vector<16x128xf32>
    %171 = arith.addf %169, %170 : vector<16x128xf32>
    %172 = vector.extract_strided_slice %171 {offsets = [0, 0], sizes = [2, 128], strides = [1, 1]} : vector<16x128xf32> to vector<2x128xf32>
    %173 = vector.extract_strided_slice %171 {offsets = [2, 0], sizes = [2, 128], strides = [1, 1]} : vector<16x128xf32> to vector<2x128xf32>
    %174 = vector.extract_strided_slice %171 {offsets = [4, 0], sizes = [2, 128], strides = [1, 1]} : vector<16x128xf32> to vector<2x128xf32>
    %175 = vector.extract_strided_slice %171 {offsets = [6, 0], sizes = [2, 128], strides = [1, 1]} : vector<16x128xf32> to vector<2x128xf32>
    %176 = vector.extract_strided_slice %171 {offsets = [8, 0], sizes = [2, 128], strides = [1, 1]} : vector<16x128xf32> to vector<2x128xf32>
    %177 = vector.extract_strided_slice %171 {offsets = [10, 0], sizes = [2, 128], strides = [1, 1]} : vector<16x128xf32> to vector<2x128xf32>
    %178 = vector.extract_strided_slice %171 {offsets = [12, 0], sizes = [2, 128], strides = [1, 1]} : vector<16x128xf32> to vector<2x128xf32>
    %179 = vector.extract_strided_slice %171 {offsets = [14, 0], sizes = [2, 128], strides = [1, 1]} : vector<16x128xf32> to vector<2x128xf32>
    %180 = tpu.iota {dimensions = array<i32: 1>} : vector<1x128xi32>
    %c32_i32_82 = arith.constant 32 : i32
    %181 = vector.broadcast %c32_i32_82 : i32 to vector<1x128xi32>
    %182 = arith.cmpi slt, %180, %181 : vector<1x128xi32>
    %cst_83 = arith.constant 0.000000e+00 : f32
    %183 = vector.broadcast %cst_83 : f32 to vector<2x128xf32>
    %184 = arith.truncf %183 : vector<2x128xf32> to vector<2x128xbf16>
    %cst_84 = arith.constant dense<0.000000e+00> : vector<2x128xf32>
    %185 = tpu.matmul %184, %2, %cst_84 {dimension_numbers = #tpu.dot_dimension_numbers<[1], [0], [0], [1], [0, 0, 1, 1], [], []>} : vector<2x128xbf16>, vector<128x128xbf16>, vector<2x128xf32> -> vector<2x128xf32>
    %186 = arith.addf %185, %172 : vector<2x128xf32>
    %187 = math.tanh %186 : vector<2x128xf32>
    %188 = arith.truncf %187 : vector<2x128xf32> to vector<2x128xbf16>
    %cst_85 = arith.constant dense<0.000000e+00> : vector<2x128xf32>
    %189 = tpu.matmul %188, %2, %cst_85 {dimension_numbers = #tpu.dot_dimension_numbers<[1], [0], [0], [1], [0, 0, 1, 1], [], []>} : vector<2x128xbf16>, vector<128x128xbf16>, vector<2x128xf32> -> vector<2x128xf32>
    %190 = arith.addf %189, %173 : vector<2x128xf32>
    %191 = math.tanh %190 : vector<2x128xf32>
    %192 = arith.truncf %191 : vector<2x128xf32> to vector<2x128xbf16>
    %cst_86 = arith.constant dense<0.000000e+00> : vector<2x128xf32>
    %193 = tpu.matmul %192, %2, %cst_86 {dimension_numbers = #tpu.dot_dimension_numbers<[1], [0], [0], [1], [0, 0, 1, 1], [], []>} : vector<2x128xbf16>, vector<128x128xbf16>, vector<2x128xf32> -> vector<2x128xf32>
    %194 = arith.addf %193, %174 : vector<2x128xf32>
    %195 = math.tanh %194 : vector<2x128xf32>
    %196 = arith.truncf %195 : vector<2x128xf32> to vector<2x128xbf16>
    %cst_87 = arith.constant dense<0.000000e+00> : vector<2x128xf32>
    %197 = tpu.matmul %196, %2, %cst_87 {dimension_numbers = #tpu.dot_dimension_numbers<[1], [0], [0], [1], [0, 0, 1, 1], [], []>} : vector<2x128xbf16>, vector<128x128xbf16>, vector<2x128xf32> -> vector<2x128xf32>
    %198 = arith.addf %197, %175 : vector<2x128xf32>
    %199 = math.tanh %198 : vector<2x128xf32>
    %200 = arith.truncf %199 : vector<2x128xf32> to vector<2x128xbf16>
    %cst_88 = arith.constant dense<0.000000e+00> : vector<2x128xf32>
    %201 = tpu.matmul %200, %2, %cst_88 {dimension_numbers = #tpu.dot_dimension_numbers<[1], [0], [0], [1], [0, 0, 1, 1], [], []>} : vector<2x128xbf16>, vector<128x128xbf16>, vector<2x128xf32> -> vector<2x128xf32>
    %202 = arith.addf %201, %176 : vector<2x128xf32>
    %203 = math.tanh %202 : vector<2x128xf32>
    %204 = arith.truncf %203 : vector<2x128xf32> to vector<2x128xbf16>
    %cst_89 = arith.constant dense<0.000000e+00> : vector<2x128xf32>
    %205 = tpu.matmul %204, %2, %cst_89 {dimension_numbers = #tpu.dot_dimension_numbers<[1], [0], [0], [1], [0, 0, 1, 1], [], []>} : vector<2x128xbf16>, vector<128x128xbf16>, vector<2x128xf32> -> vector<2x128xf32>
    %206 = arith.addf %205, %177 : vector<2x128xf32>
    %207 = math.tanh %206 : vector<2x128xf32>
    %208 = arith.truncf %207 : vector<2x128xf32> to vector<2x128xbf16>
    %cst_90 = arith.constant dense<0.000000e+00> : vector<2x128xf32>
    %209 = tpu.matmul %208, %2, %cst_90 {dimension_numbers = #tpu.dot_dimension_numbers<[1], [0], [0], [1], [0, 0, 1, 1], [], []>} : vector<2x128xbf16>, vector<128x128xbf16>, vector<2x128xf32> -> vector<2x128xf32>
    %210 = arith.addf %209, %178 : vector<2x128xf32>
    %211 = math.tanh %210 : vector<2x128xf32>
    %212 = vector.shape_cast %182 : vector<1x128xi1> to vector<1x128xi1>
    %213 = vector.broadcast %212 : vector<1x128xi1> to vector<2x128xi1>
    %214 = arith.select %213, %211, %207 : vector<2x128xi1>, vector<2x128xf32>
    %215 = arith.truncf %214 : vector<2x128xf32> to vector<2x128xbf16>
    %cst_91 = arith.constant dense<0.000000e+00> : vector<2x128xf32>
    %216 = tpu.matmul %215, %2, %cst_91 {dimension_numbers = #tpu.dot_dimension_numbers<[1], [0], [0], [1], [0, 0, 1, 1], [], []>} : vector<2x128xbf16>, vector<128x128xbf16>, vector<2x128xf32> -> vector<2x128xf32>
    %217 = arith.addf %216, %179 : vector<2x128xf32>
    %218 = math.tanh %217 : vector<2x128xf32>
    %219 = vector.shape_cast %182 : vector<1x128xi1> to vector<1x128xi1>
    %220 = vector.broadcast %219 : vector<1x128xi1> to vector<2x128xi1>
    %221 = arith.select %220, %218, %214 : vector<2x128xi1>, vector<2x128xf32>
    %222 = arith.truncf %221 : vector<2x128xf32> to vector<2x128xbf16>
    %cst_92 = arith.constant dense<0.000000e+00> : vector<2x128xf32>
    %223 = tpu.matmul %222, %3, %cst_92 {dimension_numbers = #tpu.dot_dimension_numbers<[1], [0], [0], [1], [0, 0, 1, 1], [], []>} : vector<2x128xbf16>, vector<128x128xbf16>, vector<2x128xf32> -> vector<2x128xf32>
    %224 = vector.broadcast %4 : vector<1x128xf32> to vector<2x128xf32>
    %225 = arith.addf %223, %224 : vector<2x128xf32>
    %cst_93 = arith.constant dense<0xFF800000> : vector<2xf32>
    %226 = vector.multi_reduction <maximumf>, %225, %cst_93 [1] : vector<2x128xf32> to vector<2xf32>
    %227 = vector.shape_cast %226 : vector<2xf32> to vector<2x1xf32>
    %228 = vector.broadcast %227 : vector<2x1xf32> to vector<2x128xf32>
    %229 = arith.subf %225, %228 : vector<2x128xf32>
    %230 = math.exp %229 : vector<2x128xf32>
    %cst_94 = arith.constant dense<0.000000e+00> : vector<2xf32>
    %231 = vector.multi_reduction <add>, %230, %cst_94 [1] : vector<2x128xf32> to vector<2xf32>
    %232 = vector.shape_cast %231 : vector<2xf32> to vector<2x1xf32>
    %233 = math.log %232 : vector<2x1xf32>
    %234 = arith.addf %233, %227 : vector<2x1xf32>
    %235 = vector.broadcast %234 : vector<2x1xf32> to vector<2x128xf32>
    %236 = arith.subf %225, %235 : vector<2x128xf32>
    %c0_95 = arith.constant 0 : index
    %c0_96 = arith.constant 0 : index
    %237 = vector.load %arg7[%c0_95, %c0_96] : memref<2x128xf32, #tpu.memory_space<vmem>>, vector<2x128xf32>
    tpu.vector_store %arg7[%c0_95, %c0_96], %236 {strides = array<i32>} : memref<2x128xf32, #tpu.memory_space<vmem>>, vector<2x128xf32>,
    return
  }
}

</mosaic_0001>

<llo_original>
// kernel: tpu_custom_call.1
$region0: #{tpu_custom_call.1}
  #allocation0 [shape = 'u32[]', space=smem, size = 0x4, offset = 0x4, fixed_abs, tag = 'smem constant byte address 0x4 - core index']
  #allocation1 [shape = 'u32[144,128]{1,0:T(1,128)}', space=vmem, size = 0x12000, scoped, tag = 'internal scratch']
  %s0 = inlined_call_operand.hbm [shape: s32[2,8], index: 0, kind: input, shape index: {}]
  %s1 = inlined_call_operand.vmem [shape: s32[2,6], index: 1, kind: input, shape index: {}]
  %s2 = inlined_call_operand.hbm [shape: bf16[128,128], index: 2, kind: input, shape index: {}]
  %s3 = inlined_call_operand.vmem [shape: f32[1,128], index: 3, kind: input, shape index: {}]
  %s4 = inlined_call_operand.hbm [shape: bf16[128,128], index: 4, kind: input, shape index: {}]
  %s5 = inlined_call_operand.hbm [shape: bf16[128,128], index: 5, kind: input, shape index: {}]
  %s6 = inlined_call_operand.vmem [shape: f32[1,128], index: 6, kind: input, shape index: {}]
  %s7 = inlined_call_operand.hbm [shape: f32[2,128], index: 7, kind: output, shape index: {}]
  %s8 = sld [smem:[#allocation0]]
  $region58: #{tpu_custom_call.1} parent=0
    _
  %s10 = ssub.s32 1, %s8
  %s11 = scalar_select 0, %s10, %s8
  $region1: #{tpu_custom_call.1} parent=0
    #allocation2 [shape = 'u8[1024]{0}', space=smem, size = 0x400, scoped, tag = 'input window, operand 0, single buffered']
    #allocation3 [shape = 's32[1]{0}', space=sflag, size = 0x4, scoped, tag = 'scoped memory for tpu_custom_call.1']
    #allocation4 [shape = 's32[1]{0}', space=sflag, size = 0x4, scoped, tag = 'scoped memory for tpu_custom_call.1']
    #allocation5 [shape = 's32[1]{0}', space=sflag, size = 0x4, scoped, tag = 'scoped memory for tpu_custom_call.1']
    #allocation6 [shape = 's32[1]{0}', space=sflag, size = 0x4, scoped, tag = 'scoped memory for tpu_custom_call.1']
    #allocation7 [shape = 'u8[1024]{0}', space=smem, size = 0x400, scoped, tag = 'input window, operand 1, single buffered']
    #allocation8 [shape = 'u8[32768]{0}', space=vmem, size = 0x8000, scoped, tag = 'input window, operand 2, single buffered']
    #allocation9 [shape = 'u8[32768]{0}', space=vmem, size = 0x8000, scoped, tag = 'input window, operand 4, single buffered']
    #allocation10 [shape = 's32[1]{0}', space=sflag, size = 0x4, scoped, tag = 'scoped memory for tpu_custom_call.1']
    #allocation11 [shape = 'u8[32768]{0}', space=vmem, size = 0x8000, scoped, tag = 'input window, operand 5, single buffered']
    #allocation12 [shape = 'u8[1024]{0}', space=vmem, size = 0x400, scoped, tag = 'output window, operand 0, single buffered']
    %12 = vsyncpa [#allocation5], 0
    %13 = vsyncpa [#allocation6], 0
    %14 = vsyncpa [#allocation3], 0
    %15 = vsyncpa [#allocation10], 0
    %16 = vsyncpa [#allocation4], 0
    // Predicated region
    $region2: #{tpu_custom_call.1} parent=1 // pred_check
      _
    $region3: #{tpu_custom_call.1} parent=1 // pred_check_branch
      %18 = sbr.rel (0) target = $region5
    $region4: #{tpu_custom_call.1} parent=1 // pred_region
      %s20 = ssub.s32 32, 32
      %21 = vsyncadd [#allocation5], %s20
      %24 = dma.hbm_to_smem %s0, 32, [#allocation2], [#allocation5]
    $region5: #{tpu_custom_call.1} parent=1 // pred_fallthru
      _
    // Predicated region
    $region6: #{tpu_custom_call.1} parent=1 // pred_check
      _
    $region7: #{tpu_custom_call.1} parent=1 // pred_check_branch
      %26 = sbr.rel (0) target = $region9
    $region8: #{tpu_custom_call.1} parent=1 // pred_region
      %s28 = ssub.s32 32, 32
      %29 = vsyncadd [#allocation6], %s28
      %s31 = sshll.u32 %s1, 4
      %s32 = int_to_ptr.vmem [resolvable:$true] %s31
      %34 = dma.vmem_to_smem %s32, 32, [#allocation7], [#allocation6]
    $region9: #{tpu_custom_call.1} parent=1 // pred_fallthru
      _
    // Predicated region
    $region10: #{tpu_custom_call.1} parent=1 // pred_check
      _
    $region11: #{tpu_custom_call.1} parent=1 // pred_check_branch
      %36 = sbr.rel (0) target = $region13
    $region12: #{tpu_custom_call.1} parent=1 // pred_region
      %s38 = ssub.s32 1024, 1024
      %39 = vsyncadd [#allocation3], %s38
      %s40 = sshll.u32 [#allocation8], 4
      %s41 = int_to_ptr.vmem [resolvable:$true] %s40
      %46 = dma.hbm_to_vmem [thread:$0]  %s2, 1024, %s41, [#allocation3], 64, 64, 4
    $region13: #{tpu_custom_call.1} parent=1 // pred_fallthru
      _
    // Predicated region
    $region14: #{tpu_custom_call.1} parent=1 // pred_check
      _
    $region15: #{tpu_custom_call.1} parent=1 // pred_check_branch
      %48 = sbr.rel (0) target = $region17
    $region16: #{tpu_custom_call.1} parent=1 // pred_region
      _
    $region17: #{tpu_custom_call.1} parent=1 // pred_fallthru
      _
    // Predicated region
    $region18: #{tpu_custom_call.1} parent=1 // pred_check
      _
    $region19: #{tpu_custom_call.1} parent=1 // pred_check_branch
      %50 = sbr.rel (0) target = $region21
    $region20: #{tpu_custom_call.1} parent=1 // pred_region
      %s52 = ssub.s32 1024, 1024
      %53 = vsyncadd [#allocation10], %s52
      %s54 = sshll.u32 [#allocation9], 4
      %s55 = int_to_ptr.vmem [resolvable:$true] %s54
      %60 = dma.hbm_to_vmem [thread:$0]  %s4, 1024, %s55, [#allocation10], 64, 64, 4
    $region21: #{tpu_custom_call.1} parent=1 // pred_fallthru
      _
    // Predicated region
    $region22: #{tpu_custom_call.1} parent=1 // pred_check
      _
    $region23: #{tpu_custom_call.1} parent=1 // pred_check_branch
      %62 = sbr.rel (0) target = $region25
    $region24: #{tpu_custom_call.1} parent=1 // pred_region
      %s64 = ssub.s32 1024, 1024
      %65 = vsyncadd [#allocation10], %s64
      %s66 = sshll.u32 [#allocation11], 4
      %s67 = int_to_ptr.vmem [resolvable:$true] %s66
      %72 = dma.hbm_to_vmem [thread:$0]  %s5, 1024, %s67, [#allocation10], 64, 64, 4
    $region25: #{tpu_custom_call.1} parent=1 // pred_fallthru
      _
    // Predicated region
    $region26: #{tpu_custom_call.1} parent=1 // pred_check
      _
    $region27: #{tpu_custom_call.1} parent=1 // pred_check_branch
      %74 = sbr.rel (0) target = $region29
    $region28: #{tpu_custom_call.1} parent=1 // pred_region
      _
    $region29: #{tpu_custom_call.1} parent=1 // pred_fallthru
      _
    // Predicated region
    $region30: #{tpu_custom_call.1} parent=1 // pred_check
      _
    $region31: #{tpu_custom_call.1} parent=1 // pred_check_branch
      %76 = sbr.rel (0) target = $region33
    $region32: #{tpu_custom_call.1} parent=1 // pred_region
      %77 = dma.done [#allocation5], 32
    $region33: #{tpu_custom_call.1} parent=1 // pred_fallthru
      _
    // Predicated region
    $region34: #{tpu_custom_call.1} parent=1 // pred_check
      _
    $region35: #{tpu_custom_call.1} parent=1 // pred_check_branch
      %79 = sbr.rel (0) target = $region37
    $region36: #{tpu_custom_call.1} parent=1 // pred_region
      %80 = dma.done [#allocation6], 32
    $region37: #{tpu_custom_call.1} parent=1 // pred_fallthru
      _
    // Predicated region
    $region38: #{tpu_custom_call.1} parent=1 // pred_check
      _
    $region39: #{tpu_custom_call.1} parent=1 // pred_check_branch
      %82 = sbr.rel (0) target = $region41
    $region40: #{tpu_custom_call.1} parent=1 // pred_region
      %83 = dma.done [#allocation3], 1024
    $region41: #{tpu_custom_call.1} parent=1 // pred_fallthru
      _
    // Predicated region
    $region42: #{tpu_custom_call.1} parent=1 // pred_check
      _
    $region43: #{tpu_custom_call.1} parent=1 // pred_check_branch
      %85 = sbr.rel (0) target = $region45
    $region44: #{tpu_custom_call.1} parent=1 // pred_region
      %86 = dma.done [#allocation10], 1024
    $region45: #{tpu_custom_call.1} parent=1 // pred_fallthru
      _
    // Predicated region
    $region46: #{tpu_custom_call.1} parent=1 // pred_check
      _
    $region47: #{tpu_custom_call.1} parent=1 // pred_check_branch
      %88 = sbr.rel (0) target = $region49
    $region48: #{tpu_custom_call.1} parent=1 // pred_region
      %89 = dma.done [#allocation10], 1024
    $region49: #{tpu_custom_call.1} parent=1 // pred_fallthru
      _
    %90 = sfence
    %v92 = vld [vmem:[#allocation8] sm:$0xf]
    %v93 = vld [vmem:[#allocation8 + $0x4] sm:$0xf]
    %v94 = vld [vmem:[#allocation8 + $0x8] sm:$0xf]
    %v95 = vld [vmem:[#allocation8 + $0xc] sm:$0xf]
    %v96 = vld [vmem:[#allocation8 + $0x10] sm:$0xf]
    %v97 = vld [vmem:[#allocation8 + $0x14] sm:$0xf]
    %v98 = vld [vmem:[#allocation8 + $0x18] sm:$0xf]
    %v99 = vld [vmem:[#allocation8 + $0x1c] sm:$0xf]
    %v100 = vld [vmem:[#allocation8 + $0x20] sm:$0xf]
    %v101 = vld [vmem:[#allocation8 + $0x24] sm:$0xf]
    %v102 = vld [vmem:[#allocation8 + $0x28] sm:$0xf]
    %v103 = vld [vmem:[#allocation8 + $0x2c] sm:$0xf]
    %v104 = vld [vmem:[#allocation8 + $0x30] sm:$0xf]
    %v105 = vld [vmem:[#allocation8 + $0x34] sm:$0xf]
    %v106 = vld [vmem:[#allocation8 + $0x38] sm:$0xf]
    %v107 = vld [vmem:[#allocation8 + $0x3c] sm:$0xf]
    %v108 = vld [vmem:[%s3] sm:$0x1]
    %v109 = vld [vmem:[#allocation9] sm:$0xf]
    %v110 = vld [vmem:[#allocation9 + $0x4] sm:$0xf]
    %v111 = vld [vmem:[#allocation9 + $0x8] sm:$0xf]
    %v112 = vld [vmem:[#allocation9 + $0xc] sm:$0xf]
    %v113 = vld [vmem:[#allocation9 + $0x10] sm:$0xf]
    %v114 = vld [vmem:[#allocation9 + $0x14] sm:$0xf]
    %v115 = vld [vmem:[#allocation9 + $0x18] sm:$0xf]
    %v116 = vld [vmem:[#allocation9 + $0x1c] sm:$0xf]
    %v117 = vld [vmem:[#allocation9 + $0x20] sm:$0xf]
    %v118 = vld [vmem:[#allocation9 + $0x24] sm:$0xf]
    %v119 = vld [vmem:[#allocation9 + $0x28] sm:$0xf]
    %v120 = vld [vmem:[#allocation9 + $0x2c] sm:$0xf]
    %v121 = vld [vmem:[#allocation9 + $0x30] sm:$0xf]
    %v122 = vld [vmem:[#allocation9 + $0x34] sm:$0xf]
    %v123 = vld [vmem:[#allocation9 + $0x38] sm:$0xf]
    %v124 = vld [vmem:[#allocation9 + $0x3c] sm:$0xf]
    %v125 = vld [vmem:[#allocation11] sm:$0xf]
    %v126 = vld [vmem:[#allocation11 + $0x4] sm:$0xf]
    %v127 = vld [vmem:[#allocation11 + $0x8] sm:$0xf]
    %v128 = vld [vmem:[#allocation11 + $0xc] sm:$0xf]
    %v129 = vld [vmem:[#allocation11 + $0x10] sm:$0xf]
    %v130 = vld [vmem:[#allocation11 + $0x14] sm:$0xf]
    %v131 = vld [vmem:[#allocation11 + $0x18] sm:$0xf]
    %v132 = vld [vmem:[#allocation11 + $0x1c] sm:$0xf]
    %v133 = vld [vmem:[#allocation11 + $0x20] sm:$0xf]
    %v134 = vld [vmem:[#allocation11 + $0x24] sm:$0xf]
    %v135 = vld [vmem:[#allocation11 + $0x28] sm:$0xf]
    %v136 = vld [vmem:[#allocation11 + $0x2c] sm:$0xf]
    %v137 = vld [vmem:[#allocation11 + $0x30] sm:$0xf]
    %v138 = vld [vmem:[#allocation11 + $0x34] sm:$0xf]
    %v139 = vld [vmem:[#allocation11 + $0x38] sm:$0xf]
    %v140 = vld [vmem:[#allocation11 + $0x3c] sm:$0xf]
    %v141 = vld [vmem:[%s6] sm:$0x1]
    %v142 = vlaneseq
    %v143 = vshrl.u32 %v142, 7
    %v144 = vadd.s32 %v143, 8
    %v145 = vlaneseq
    %v146 = vand.u32 %v145, 127
    %vm147 = vcmp.eq.s32.totalorder %v143, 0
    %vm148 = vcmp.eq.s32.totalorder %v144, 0
    %s149 = sld [smem:[#allocation2]]
    %v150 = vstv %s149
    %v151 = vsel %vm147, %v150, 4294967295
    %v152 = vsel %vm148, %v150, 4294967295
    %s153 = sld [smem:[#allocation7]]
    %s154 = sadd.s32 %s153, 32
    %v155 = vstv %s154
    %v156 = vsel %vm147, %v155, 4294967295
    %v157 = vsel %vm148, %v155, 4294967295
    %vm158 = vcmp.eq.s32.totalorder %v143, 1
    %vm159 = vcmp.eq.s32.totalorder %v144, 1
    %s160 = sld [smem:[#allocation2 + $0x80]]
    %v161 = vstv %s160
    %v162 = vsel %vm158, %v161, %v151
    %v163 = vsel %vm159, %v161, %v152
    %s164 = sld [smem:[#allocation7 + $0x80]]
    %s165 = sadd.s32 %s164, 32
    %v166 = vstv %s165
    %v167 = vsel %vm158, %v166, %v156
    %v168 = vsel %vm159, %v166, %v157
    %vm169 = vcmp.eq.s32.totalorder %v143, 2
    %vm170 = vcmp.eq.s32.totalorder %v144, 2
    %s171 = sld [smem:[#allocation2 + $0x1]]
    %v172 = vstv %s171
    %v173 = vsel %vm169, %v172, %v162
    %v174 = vsel %vm170, %v172, %v163
    %s175 = sld [smem:[#allocation7 + $0x1]]
    %s176 = sadd.s32 %s175, 32
    %v177 = vstv %s176
    %v178 = vsel %vm169, %v177, %v167
    %v179 = vsel %vm170, %v177, %v168
    %vm180 = vcmp.eq.s32.totalorder %v143, 3
    %vm181 = vcmp.eq.s32.totalorder %v144, 3
    %s182 = sld [smem:[#allocation2 + $0x81]]
    %v183 = vstv %s182
    %v184 = vsel %vm180, %v183, %v173
    %v185 = vsel %vm181, %v183, %v174
    %s186 = sld [smem:[#allocation7 + $0x81]]
    %s187 = sadd.s32 %s186, 32
    %v188 = vstv %s187
    %v189 = vsel %vm180, %v188, %v178
    %v190 = vsel %vm181, %v188, %v179
    %vm191 = vcmp.eq.s32.totalorder %v143, 4
    %vm192 = vcmp.eq.s32.totalorder %v144, 4
    %s193 = sld [smem:[#allocation2 + $0x2]]
    %v194 = vstv %s193
    %v195 = vsel %vm191, %v194, %v184
    %v196 = vsel %vm192, %v194, %v185
    %s197 = sld [smem:[#allocation7 + $0x2]]
    %s198 = sadd.s32 %s197, 32
    %v199 = vstv %s198
    %v200 = vsel %vm191, %v199, %v189
    %v201 = vsel %vm192, %v199, %v190
    %vm202 = vcmp.eq.s32.totalorder %v143, 5
    %vm203 = vcmp.eq.s32.totalorder %v144, 5
    %s204 = sld [smem:[#allocation2 + $0x82]]
    %v205 = vstv %s204
    %v206 = vsel %vm202, %v205, %v195
    %v207 = vsel %vm203, %v205, %v196
    %s208 = sld [smem:[#allocation7 + $0x82]]
    %s209 = sadd.s32 %s208, 32
    %v210 = vstv %s209
    %v211 = vsel %vm202, %v210, %v200
    %v212 = vsel %vm203, %v210, %v201
    %vm213 = vcmp.eq.s32.totalorder %v143, 6
    %vm214 = vcmp.eq.s32.totalorder %v144, 6
    %s215 = sld [smem:[#allocation2 + $0x3]]
    %v216 = vstv %s215
    %v217 = vsel %vm213, %v216, %v206
    %v218 = vsel %vm214, %v216, %v207
    %s219 = sld [smem:[#allocation7 + $0x3]]
    %s220 = sadd.s32 %s219, 32
    %v221 = vstv %s220
    %v222 = vsel %vm213, %v221, %v211
    %v223 = vsel %vm214, %v221, %v212
    %vm224 = vcmp.eq.s32.totalorder %v143, 7
    %vm225 = vcmp.eq.s32.totalorder %v144, 7
    %s226 = sld [smem:[#allocation2 + $0x83]]
    %v227 = vstv %s226
    %v228 = vsel %vm224, %v227, %v217
    %v229 = vsel %vm225, %v227, %v218
    %s230 = sld [smem:[#allocation7 + $0x83]]
    %s231 = sadd.s32 %s230, 32
    %v232 = vstv %s231
    %v233 = vsel %vm224, %v232, %v222
    %v234 = vsel %vm225, %v232, %v223
    %vm235 = vcmp.eq.s32.totalorder %v143, 8
    %vm236 = vcmp.eq.s32.totalorder %v144, 8
    %s237 = sld [smem:[#allocation2 + $0x4]]
    %v238 = vstv %s237
    %v239 = vsel %vm235, %v238, %v228
    %v240 = vsel %vm236, %v238, %v229
    %s241 = sld [smem:[#allocation7 + $0x4]]
    %s242 = sadd.s32 %s241, 32
    %v243 = vstv %s242
    %v244 = vsel %vm235, %v243, %v233
    %v245 = vsel %vm236, %v243, %v234
    %vm246 = vcmp.eq.s32.totalorder %v143, 9
    %vm247 = vcmp.eq.s32.totalorder %v144, 9
    %s248 = sld [smem:[#allocation2 + $0x84]]
    %v249 = vstv %s248
    %v250 = vsel %vm246, %v249, %v239
    %v251 = vsel %vm247, %v249, %v240
    %s252 = sld [smem:[#allocation7 + $0x84]]
    %s253 = sadd.s32 %s252, 32
    %v254 = vstv %s253
    %v255 = vsel %vm246, %v254, %v244
    %v256 = vsel %vm247, %v254, %v245
    %vm257 = vcmp.eq.s32.totalorder %v143, 10
    %vm258 = vcmp.eq.s32.totalorder %v144, 10
    %s259 = sld [smem:[#allocation2 + $0x5]]
    %v260 = vstv %s259
    %v261 = vsel %vm257, %v260, %v250
    %v262 = vsel %vm258, %v260, %v251
    %s263 = sld [smem:[#allocation7 + $0x5]]
    %s264 = sadd.s32 %s263, 32
    %v265 = vstv %s264
    %v266 = vsel %vm257, %v265, %v255
    %v267 = vsel %vm258, %v265, %v256
    %vm268 = vcmp.eq.s32.totalorder %v143, 11
    %vm269 = vcmp.eq.s32.totalorder %v144, 11
    %s270 = sld [smem:[#allocation2 + $0x85]]
    %v271 = vstv %s270
    %v272 = vsel %vm268, %v271, %v261
    %v273 = vsel %vm269, %v271, %v262
    %s274 = sld [smem:[#allocation7 + $0x85]]
    %s275 = sadd.s32 %s274, 32
    %v276 = vstv %s275
    %v277 = vsel %vm268, %v276, %v266
    %v278 = vsel %vm269, %v276, %v267
    %vm279 = vcmp.eq.s32.totalorder %v143, 12
    %vm280 = vcmp.eq.s32.totalorder %v144, 12
    %s281 = sld [smem:[#allocation2 + $0x6]]
    %v282 = vstv %s281
    %v283 = vsel %vm279, %v282, %v272
    %v284 = vsel %vm280, %v282, %v273
    %vm285 = vcmp.eq.s32.totalorder %v143, 13
    %vm286 = vcmp.eq.s32.totalorder %v144, 13
    %s287 = sld [smem:[#allocation2 + $0x86]]
    %v288 = vstv %s287
    %v289 = vsel %vm285, %v288, %v283
    %v290 = vsel %vm286, %v288, %v284
    %vm291 = vcmp.eq.s32.totalorder %v143, 14
    %vm292 = vcmp.eq.s32.totalorder %v144, 14
    %s293 = sld [smem:[#allocation2 + $0x7]]
    %v294 = vstv %s293
    %v295 = vsel %vm291, %v294, %v289
    %v296 = vsel %vm292, %v294, %v290
    %vm297 = vcmp.eq.s32.totalorder %v143, 15
    %vm298 = vcmp.eq.s32.totalorder %v144, 15
    %s299 = sld [smem:[#allocation2 + $0x87]]
    %v300 = vstv %s299
    %v301 = vsel %vm297, %v300, %v295
    %v302 = vsel %vm298, %v300, %v296
    %vm303 = vcmp.eq.s32.totalorder %v146, %v301
    %vm304 = vcmp.eq.s32.totalorder %v146, %v302
    %vm305 = vcmp.eq.s32.totalorder %v146, %v277
    %vm306 = vcmp.eq.s32.totalorder %v146, %v278
    %vm307 = vmor %vm303, %vm305
    %vm308 = vmor %vm304, %vm306
    %v309 = vsel %vm307, 1, 0
    %v310 = vsel %vm308, 1, 0
    %v311 = vcvt.s32.f32 %v309
    %v312 = vcvt.s32.f32 %v310
    %v313 = vpack.c.bf16 %v312, %v311
    %v315 = vlaneseq
    %v316 = vshrl.u32 %v315, 7
    %v317 = vsub.s32 0, %v316
    %v318 = vrot.slane %v108, %v317
    %v336 = vunpack.c.l.b16 %v92
    %v337 = vunpack.c.l.b16 %v93
    %v338 = vunpack.c.l.b16 %v94
    %v339 = vunpack.c.l.b16 %v95
    %v340 = vunpack.c.l.b16 %v96
    %v341 = vunpack.c.l.b16 %v97
    %v342 = vunpack.c.l.b16 %v98
    %v343 = vunpack.c.l.b16 %v99
    %v344 = vunpack.c.l.b16 %v100
    %v345 = vunpack.c.l.b16 %v101
    %v346 = vunpack.c.l.b16 %v102
    %v347 = vunpack.c.l.b16 %v103
    %v348 = vunpack.c.l.b16 %v104
    %v349 = vunpack.c.l.b16 %v105
    %v350 = vunpack.c.l.b16 %v106
    %v351 = vunpack.c.l.b16 %v107
    %v352 = vpack.c.b16 %v337, %v336
    %v353 = vpack.c.b16 %v339, %v338
    %v354 = vpack.c.b16 %v341, %v340
    %v355 = vpack.c.b16 %v343, %v342
    %v356 = vpack.c.b16 %v345, %v344
    %v357 = vpack.c.b16 %v347, %v346
    %v358 = vpack.c.b16 %v349, %v348
    %v359 = vpack.c.b16 %v351, %v350
    %368 = vmatprep.subr.bf16.mxu0 0
    %369 = vmatpush1.bf16.msra.mxu0 %v352
    %370 = vmatprep.subr.bf16.mxu0 0
    %371 = vmatpush1.bf16.msra.mxu0 %v353
    %372 = vmatprep.subr.bf16.mxu0 0
    %373 = vmatpush1.bf16.msra.mxu0 %v354
    %374 = vmatprep.subr.bf16.mxu0 0
    %375 = vmatpush1.bf16.msra.mxu0 %v355
    %376 = vmatprep.subr.bf16.mxu0 0
    %377 = vmatpush1.bf16.msra.mxu0 %v356
    %378 = vmatprep.subr.bf16.mxu0 0
    %379 = vmatpush1.bf16.msra.mxu0 %v357
    %380 = vmatprep.subr.bf16.mxu0 0
    %381 = vmatpush1.bf16.msra.mxu0 %v358
    %382 = vmatprep.subr.bf16.mxu0 0
    %383 = vmatpush1.bf16.msra.mxu0 %v359
    %384 = vmatprep.subr.bf16.mxu0 0
    %385 = vmatpush1.bf16.msra.mxu0 0
    %386 = vmatprep.subr.bf16.mxu0 0
    %387 = vmatpush1.bf16.msra.mxu0 0
    %388 = vmatprep.subr.bf16.mxu0 0
    %389 = vmatpush1.bf16.msra.mxu0 0
    %390 = vmatprep.subr.bf16.mxu0 0
    %391 = vmatpush1.bf16.msra.mxu0 0
    %392 = vmatprep.subr.bf16.mxu0 0
    %393 = vmatpush1.bf16.msra.mxu0 0
    %394 = vmatprep.subr.bf16.mxu0 0
    %395 = vmatpush1.bf16.msra.mxu0 0
    %396 = vmatprep.subr.bf16.mxu0 0
    %397 = vmatpush1.bf16.msra.mxu0 0
    %398 = vmatprep.subr.bf16.mxu0 0
    %399 = vmatpush1.bf16.msra.mxu0 0
    %400 = vmatprep.mubr.bf16.mxu0 0
    %401 = vmatmul.mubr.bf16.gmra.mrb[0].mxu0 %v313
    %v402 = vpop.f32.mrb[0].mxu0
    %v403 = vadd.f32 %v318, %v402
    %v404 = vpop.f32.mrb[0].mxu0
    %v405 = vpop.f32.mrb[0].mxu0
    %v406 = vadd.f32 %v318, %v405
    %v407 = vpop.f32.mrb[0].mxu0
    %408 = vdwg.mxu0
    %vm409 = vcmp.lt.s32.totalorder %v146, 32
    %v426 = vunpack.c.l.b16 %v109
    %v427 = vunpack.c.l.b16 %v110
    %v428 = vunpack.c.l.b16 %v111
    %v429 = vunpack.c.l.b16 %v112
    %v430 = vunpack.c.l.b16 %v113
    %v431 = vunpack.c.l.b16 %v114
    %v432 = vunpack.c.l.b16 %v115
    %v433 = vunpack.c.l.b16 %v116
    %v434 = vunpack.c.l.b16 %v117
    %v435 = vunpack.c.l.b16 %v118
    %v436 = vunpack.c.l.b16 %v119
    %v437 = vunpack.c.l.b16 %v120
    %v438 = vunpack.c.l.b16 %v121
    %v439 = vunpack.c.l.b16 %v122
    %v440 = vunpack.c.l.b16 %v123
    %v441 = vunpack.c.l.b16 %v124
    %v442 = vpack.c.b16 %v427, %v426
    %v443 = vpack.c.b16 %v429, %v428
    %v444 = vpack.c.b16 %v431, %v430
    %v445 = vpack.c.b16 %v433, %v432
    %v446 = vpack.c.b16 %v435, %v434
    %v447 = vpack.c.b16 %v437, %v436
    %v448 = vpack.c.b16 %v439, %v438
    %v449 = vpack.c.b16 %v441, %v440
    %458 = vmatprep.subr.bf16.mxu0 0
    %459 = vmatpush1.bf16.msra.mxu0 %v442
    %460 = vmatprep.subr.bf16.mxu0 0
    %461 = vmatpush1.bf16.msra.mxu0 %v443
    %462 = vmatprep.subr.bf16.mxu0 0
    %463 = vmatpush1.bf16.msra.mxu0 %v444
    %464 = vmatprep.subr.bf16.mxu0 0
    %465 = vmatpush1.bf16.msra.mxu0 %v445
    %466 = vmatprep.subr.bf16.mxu0 0
    %467 = vmatpush1.bf16.msra.mxu0 %v446
    %468 = vmatprep.subr.bf16.mxu0 0
    %469 = vmatpush1.bf16.msra.mxu0 %v447
    %470 = vmatprep.subr.bf16.mxu0 0
    %471 = vmatpush1.bf16.msra.mxu0 %v448
    %472 = vmatprep.subr.bf16.mxu0 0
    %473 = vmatpush1.bf16.msra.mxu0 %v449
    %474 = vmatprep.subr.bf16.mxu0 0
    %475 = vmatpush1.bf16.msra.mxu0 0
    %476 = vmatprep.subr.bf16.mxu0 0
    %477 = vmatpush1.bf16.msra.mxu0 0
    %478 = vmatprep.subr.bf16.mxu0 0
    %479 = vmatpush1.bf16.msra.mxu0 0
    %480 = vmatprep.subr.bf16.mxu0 0
    %481 = vmatpush1.bf16.msra.mxu0 0
    %482 = vmatprep.subr.bf16.mxu0 0
    %483 = vmatpush1.bf16.msra.mxu0 0
    %484 = vmatprep.subr.bf16.mxu0 0
    %485 = vmatpush1.bf16.msra.mxu0 0
    %486 = vmatprep.subr.bf16.mxu0 0
    %487 = vmatpush1.bf16.msra.mxu0 0
    %488 = vmatprep.subr.bf16.mxu0 0
    %489 = vmatpush1.bf16.msra.mxu0 0
    %490 = vmatprep.mubr.bf16.mxu0 0
    %491 = vmatmul.mubr.bf16.gmra.mrb[0].mxu0 0
    %v492 = vpop.f32.mrb[0].mxu0
    %v493 = vadd.f32 %v403, %v492
    %v494 = vpop.f32.mrb[0].mxu0
    %v495 = vpop.f32.mrb[0].mxu0
    %v496 = vpop.f32.mrb[0].mxu0
    %497 = vdwg.mxu0
    %v498 = vtanh.pop %v493
    %v499 = vpack.c.bf16 %v498, %v498
    %v501 = vrot.slane %v403, 2
    %503 = vmatprep.subr.bf16.mxu0 0
    %504 = vmatpush1.bf16.msra.mxu0 %v442
    %505 = vmatprep.subr.bf16.mxu0 0
    %506 = vmatpush1.bf16.msra.mxu0 %v443
    %507 = vmatprep.subr.bf16.mxu0 0
    %508 = vmatpush1.bf16.msra.mxu0 %v444
    %509 = vmatprep.subr.bf16.mxu0 0
    %510 = vmatpush1.bf16.msra.mxu0 %v445
    %511 = vmatprep.subr.bf16.mxu0 0
    %512 = vmatpush1.bf16.msra.mxu0 %v446
    %513 = vmatprep.subr.bf16.mxu0 0
    %514 = vmatpush1.bf16.msra.mxu0 %v447
    %515 = vmatprep.subr.bf16.mxu0 0
    %516 = vmatpush1.bf16.msra.mxu0 %v448
    %517 = vmatprep.subr.bf16.mxu0 0
    %518 = vmatpush1.bf16.msra.mxu0 %v449
    %519 = vmatprep.subr.bf16.mxu0 0
    %520 = vmatpush1.bf16.msra.mxu0 0
    %521 = vmatprep.subr.bf16.mxu0 0
    %522 = vmatpush1.bf16.msra.mxu0 0
    %523 = vmatprep.subr.bf16.mxu0 0
    %524 = vmatpush1.bf16.msra.mxu0 0
    %525 = vmatprep.subr.bf16.mxu0 0
    %526 = vmatpush1.bf16.msra.mxu0 0
    %527 = vmatprep.subr.bf16.mxu0 0
    %528 = vmatpush1.bf16.msra.mxu0 0
    %529 = vmatprep.subr.bf16.mxu0 0
    %530 = vmatpush1.bf16.msra.mxu0 0
    %531 = vmatprep.subr.bf16.mxu0 0
    %532 = vmatpush1.bf16.msra.mxu0 0
    %533 = vmatprep.subr.bf16.mxu0 0
    %534 = vmatpush1.bf16.msra.mxu0 0
    %535 = vmatprep.mubr.bf16.mxu0 0
    %536 = vmatmul.mubr.bf16.gmra.mrb[0].mxu0 %v499
    %v537 = vpop.f32.mrb[0].mxu0
    %v538 = vadd.f32 %v501, %v537
    %v539 = vpop.f32.mrb[0].mxu0
    %v540 = vpop.f32.mrb[0].mxu0
    %v541 = vpop.f32.mrb[0].mxu0
    %542 = vdwg.mxu0
    %v543 = vtanh.pop %v538
    %v544 = vpack.c.bf16 %v543, %v543
    %v545 = vrot.slane %v403, 4
    %547 = vmatprep.subr.bf16.mxu0 0
    %548 = vmatpush1.bf16.msra.mxu0 %v442
    %549 = vmatprep.subr.bf16.mxu0 0
    %550 = vmatpush1.bf16.msra.mxu0 %v443
    %551 = vmatprep.subr.bf16.mxu0 0
    %552 = vmatpush1.bf16.msra.mxu0 %v444
    %553 = vmatprep.subr.bf16.mxu0 0
    %554 = vmatpush1.bf16.msra.mxu0 %v445
    %555 = vmatprep.subr.bf16.mxu0 0
    %556 = vmatpush1.bf16.msra.mxu0 %v446
    %557 = vmatprep.subr.bf16.mxu0 0
    %558 = vmatpush1.bf16.msra.mxu0 %v447
    %559 = vmatprep.subr.bf16.mxu0 0
    %560 = vmatpush1.bf16.msra.mxu0 %v448
    %561 = vmatprep.subr.bf16.mxu0 0
    %562 = vmatpush1.bf16.msra.mxu0 %v449
    %563 = vmatprep.subr.bf16.mxu0 0
    %564 = vmatpush1.bf16.msra.mxu0 0
    %565 = vmatprep.subr.bf16.mxu0 0
    %566 = vmatpush1.bf16.msra.mxu0 0
    %567 = vmatprep.subr.bf16.mxu0 0
    %568 = vmatpush1.bf16.msra.mxu0 0
    %569 = vmatprep.subr.bf16.mxu0 0
    %570 = vmatpush1.bf16.msra.mxu0 0
    %571 = vmatprep.subr.bf16.mxu0 0
    %572 = vmatpush1.bf16.msra.mxu0 0
    %573 = vmatprep.subr.bf16.mxu0 0
    %574 = vmatpush1.bf16.msra.mxu0 0
    %575 = vmatprep.subr.bf16.mxu0 0
    %576 = vmatpush1.bf16.msra.mxu0 0
    %577 = vmatprep.subr.bf16.mxu0 0
    %578 = vmatpush1.bf16.msra.mxu0 0
    %579 = vmatprep.mubr.bf16.mxu0 0
    %580 = vmatmul.mubr.bf16.gmra.mrb[0].mxu0 %v544
    %v581 = vpop.f32.mrb[0].mxu0
    %v582 = vadd.f32 %v545, %v581
    %v583 = vpop.f32.mrb[0].mxu0
    %v584 = vpop.f32.mrb[0].mxu0
    %v585 = vpop.f32.mrb[0].mxu0
    %586 = vdwg.mxu0
    %v587 = vtanh.pop %v582
    %v588 = vpack.c.bf16 %v587, %v587
    %v589 = vrot.slane %v403, 6
    %591 = vmatprep.subr.bf16.mxu0 0
    %592 = vmatpush1.bf16.msra.mxu0 %v442
    %593 = vmatprep.subr.bf16.mxu0 0
    %594 = vmatpush1.bf16.msra.mxu0 %v443
    %595 = vmatprep.subr.bf16.mxu0 0
    %596 = vmatpush1.bf16.msra.mxu0 %v444
    %597 = vmatprep.subr.bf16.mxu0 0
    %598 = vmatpush1.bf16.msra.mxu0 %v445
    %599 = vmatprep.subr.bf16.mxu0 0
    %600 = vmatpush1.bf16.msra.mxu0 %v446
    %601 = vmatprep.subr.bf16.mxu0 0
    %602 = vmatpush1.bf16.msra.mxu0 %v447
    %603 = vmatprep.subr.bf16.mxu0 0
    %604 = vmatpush1.bf16.msra.mxu0 %v448
    %605 = vmatprep.subr.bf16.mxu0 0
    %606 = vmatpush1.bf16.msra.mxu0 %v449
    %607 = vmatprep.subr.bf16.mxu0 0
    %608 = vmatpush1.bf16.msra.mxu0 0
    %609 = vmatprep.subr.bf16.mxu0 0
    %610 = vmatpush1.bf16.msra.mxu0 0
    %611 = vmatprep.subr.bf16.mxu0 0
    %612 = vmatpush1.bf16.msra.mxu0 0
    %613 = vmatprep.subr.bf16.mxu0 0
    %614 = vmatpush1.bf16.msra.mxu0 0
    %615 = vmatprep.subr.bf16.mxu0 0
    %616 = vmatpush1.bf16.msra.mxu0 0
    %617 = vmatprep.subr.bf16.mxu0 0
    %618 = vmatpush1.bf16.msra.mxu0 0
    %619 = vmatprep.subr.bf16.mxu0 0
    %620 = vmatpush1.bf16.msra.mxu0 0
    %621 = vmatprep.subr.bf16.mxu0 0
    %622 = vmatpush1.bf16.msra.mxu0 0
    %623 = vmatprep.mubr.bf16.mxu0 0
    %624 = vmatmul.mubr.bf16.gmra.mrb[0].mxu0 %v588
    %v625 = vpop.f32.mrb[0].mxu0
    %v626 = vadd.f32 %v589, %v625
    %v627 = vpop.f32.mrb[0].mxu0
    %v628 = vpop.f32.mrb[0].mxu0
    %v629 = vpop.f32.mrb[0].mxu0
    %630 = vdwg.mxu0
    %v631 = vtanh.pop %v626
    %v632 = vpack.c.bf16 %v631, %v631
    %633 = vmatprep.subr.bf16.mxu0 0
    %634 = vmatpush1.bf16.msra.mxu0 %v442
    %635 = vmatprep.subr.bf16.mxu0 0
    %636 = vmatpush1.bf16.msra.mxu0 %v443
    %637 = vmatprep.subr.bf16.mxu0 0
    %638 = vmatpush1.bf16.msra.mxu0 %v444
    %639 = vmatprep.subr.bf16.mxu0 0
    %640 = vmatpush1.bf16.msra.mxu0 %v445
    %641 = vmatprep.subr.bf16.mxu0 0
    %642 = vmatpush1.bf16.msra.mxu0 %v446
    %643 = vmatprep.subr.bf16.mxu0 0
    %644 = vmatpush1.bf16.msra.mxu0 %v447
    %645 = vmatprep.subr.bf16.mxu0 0
    %646 = vmatpush1.bf16.msra.mxu0 %v448
    %647 = vmatprep.subr.bf16.mxu0 0
    %648 = vmatpush1.bf16.msra.mxu0 %v449
    %649 = vmatprep.subr.bf16.mxu0 0
    %650 = vmatpush1.bf16.msra.mxu0 0
    %651 = vmatprep.subr.bf16.mxu0 0
    %652 = vmatpush1.bf16.msra.mxu0 0
    %653 = vmatprep.subr.bf16.mxu0 0
    %654 = vmatpush1.bf16.msra.mxu0 0
    %655 = vmatprep.subr.bf16.mxu0 0
    %656 = vmatpush1.bf16.msra.mxu0 0
    %657 = vmatprep.subr.bf16.mxu0 0
    %658 = vmatpush1.bf16.msra.mxu0 0
    %659 = vmatprep.subr.bf16.mxu0 0
    %660 = vmatpush1.bf16.msra.mxu0 0
    %661 = vmatprep.subr.bf16.mxu0 0
    %662 = vmatpush1.bf16.msra.mxu0 0
    %663 = vmatprep.subr.bf16.mxu0 0
    %664 = vmatpush1.bf16.msra.mxu0 0
    %665 = vmatprep.mubr.bf16.mxu0 0
    %666 = vmatmul.mubr.bf16.gmra.mrb[0].mxu0 %v632
    %v667 = vpop.f32.mrb[0].mxu0
    %v668 = vadd.f32 %v406, %v667
    %v669 = vpop.f32.mrb[0].mxu0
    %v670 = vpop.f32.mrb[0].mxu0
    %v671 = vpop.f32.mrb[0].mxu0
    %672 = vdwg.mxu0
    %v673 = vtanh.pop %v668
    %v674 = vpack.c.bf16 %v673, %v673
    %v676 = vrot.slane %v406, 2
    %678 = vmatprep.subr.bf16.mxu0 0
    %679 = vmatpush1.bf16.msra.mxu0 %v442
    %680 = vmatprep.subr.bf16.mxu0 0
    %681 = vmatpush1.bf16.msra.mxu0 %v443
    %682 = vmatprep.subr.bf16.mxu0 0
    %683 = vmatpush1.bf16.msra.mxu0 %v444
    %684 = vmatprep.subr.bf16.mxu0 0
    %685 = vmatpush1.bf16.msra.mxu0 %v445
    %686 = vmatprep.subr.bf16.mxu0 0
    %687 = vmatpush1.bf16.msra.mxu0 %v446
    %688 = vmatprep.subr.bf16.mxu0 0
    %689 = vmatpush1.bf16.msra.mxu0 %v447
    %690 = vmatprep.subr.bf16.mxu0 0
    %691 = vmatpush1.bf16.msra.mxu0 %v448
    %692 = vmatprep.subr.bf16.mxu0 0
    %693 = vmatpush1.bf16.msra.mxu0 %v449
    %694 = vmatprep.subr.bf16.mxu0 0
    %695 = vmatpush1.bf16.msra.mxu0 0
    %696 = vmatprep.subr.bf16.mxu0 0
    %697 = vmatpush1.bf16.msra.mxu0 0
    %698 = vmatprep.subr.bf16.mxu0 0
    %699 = vmatpush1.bf16.msra.mxu0 0
    %700 = vmatprep.subr.bf16.mxu0 0
    %701 = vmatpush1.bf16.msra.mxu0 0
    %702 = vmatprep.subr.bf16.mxu0 0
    %703 = vmatpush1.bf16.msra.mxu0 0
    %704 = vmatprep.subr.bf16.mxu0 0
    %705 = vmatpush1.bf16.msra.mxu0 0
    %706 = vmatprep.subr.bf16.mxu0 0
    %707 = vmatpush1.bf16.msra.mxu0 0
    %708 = vmatprep.subr.bf16.mxu0 0
    %709 = vmatpush1.bf16.msra.mxu0 0
    %710 = vmatprep.mubr.bf16.mxu0 0
    %711 = vmatmul.mubr.bf16.gmra.mrb[0].mxu0 %v674
    %v712 = vpop.f32.mrb[0].mxu0
    %v713 = vadd.f32 %v676, %v712
    %v714 = vpop.f32.mrb[0].mxu0
    %v715 = vpop.f32.mrb[0].mxu0
    %v716 = vpop.f32.mrb[0].mxu0
    %717 = vdwg.mxu0
    %v718 = vtanh.pop %v713
    %v719 = vpack.c.bf16 %v718, %v718
    %v720 = vrot.slane %v406, 4
    %722 = vmatprep.subr.bf16.mxu0 0
    %723 = vmatpush1.bf16.msra.mxu0 %v442
    %724 = vmatprep.subr.bf16.mxu0 0
    %725 = vmatpush1.bf16.msra.mxu0 %v443
    %726 = vmatprep.subr.bf16.mxu0 0
    %727 = vmatpush1.bf16.msra.mxu0 %v444
    %728 = vmatprep.subr.bf16.mxu0 0
    %729 = vmatpush1.bf16.msra.mxu0 %v445
    %730 = vmatprep.subr.bf16.mxu0 0
    %731 = vmatpush1.bf16.msra.mxu0 %v446
    %732 = vmatprep.subr.bf16.mxu0 0
    %733 = vmatpush1.bf16.msra.mxu0 %v447
    %734 = vmatprep.subr.bf16.mxu0 0
    %735 = vmatpush1.bf16.msra.mxu0 %v448
    %736 = vmatprep.subr.bf16.mxu0 0
    %737 = vmatpush1.bf16.msra.mxu0 %v449
    %738 = vmatprep.subr.bf16.mxu0 0
    %739 = vmatpush1.bf16.msra.mxu0 0
    %740 = vmatprep.subr.bf16.mxu0 0
    %741 = vmatpush1.bf16.msra.mxu0 0
    %742 = vmatprep.subr.bf16.mxu0 0
    %743 = vmatpush1.bf16.msra.mxu0 0
    %744 = vmatprep.subr.bf16.mxu0 0
    %745 = vmatpush1.bf16.msra.mxu0 0
    %746 = vmatprep.subr.bf16.mxu0 0
    %747 = vmatpush1.bf16.msra.mxu0 0
    %748 = vmatprep.subr.bf16.mxu0 0
    %749 = vmatpush1.bf16.msra.mxu0 0
    %750 = vmatprep.subr.bf16.mxu0 0
    %751 = vmatpush1.bf16.msra.mxu0 0
    %752 = vmatprep.subr.bf16.mxu0 0
    %753 = vmatpush1.bf16.msra.mxu0 0
    %754 = vmatprep.mubr.bf16.mxu0 0
    %755 = vmatmul.mubr.bf16.gmra.mrb[0].mxu0 %v719
    %v756 = vpop.f32.mrb[0].mxu0
    %v757 = vadd.f32 %v720, %v756
    %v758 = vpop.f32.mrb[0].mxu0
    %v759 = vpop.f32.mrb[0].mxu0
    %v760 = vpop.f32.mrb[0].mxu0
    %761 = vdwg.mxu0
    %v762 = vtanh.pop %v757
    %v763 = vsel %vm409, 1, 0
    %vm764 = vcmp.eq.s32.totalorder %v763, 1
    %v765 = vsel %vm764, %v762, %v718
    %v766 = vpack.c.bf16 %v765, %v765
    %v767 = vrot.slane %v406, 6
    %769 = vmatprep.subr.bf16.mxu0 0
    %770 = vmatpush1.bf16.msra.mxu0 %v442
    %771 = vmatprep.subr.bf16.mxu0 0
    %772 = vmatpush1.bf16.msra.mxu0 %v443
    %773 = vmatprep.subr.bf16.mxu0 0
    %774 = vmatpush1.bf16.msra.mxu0 %v444
    %775 = vmatprep.subr.bf16.mxu0 0
    %776 = vmatpush1.bf16.msra.mxu0 %v445
    %777 = vmatprep.subr.bf16.mxu0 0
    %778 = vmatpush1.bf16.msra.mxu0 %v446
    %779 = vmatprep.subr.bf16.mxu0 0
    %780 = vmatpush1.bf16.msra.mxu0 %v447
    %781 = vmatprep.subr.bf16.mxu0 0
    %782 = vmatpush1.bf16.msra.mxu0 %v448
    %783 = vmatprep.subr.bf16.mxu0 0
    %784 = vmatpush1.bf16.msra.mxu0 %v449
    %785 = vmatprep.subr.bf16.mxu0 0
    %786 = vmatpush1.bf16.msra.mxu0 0
    %787 = vmatprep.subr.bf16.mxu0 0
    %788 = vmatpush1.bf16.msra.mxu0 0
    %789 = vmatprep.subr.bf16.mxu0 0
    %790 = vmatpush1.bf16.msra.mxu0 0
    %791 = vmatprep.subr.bf16.mxu0 0
    %792 = vmatpush1.bf16.msra.mxu0 0
    %793 = vmatprep.subr.bf16.mxu0 0
    %794 = vmatpush1.bf16.msra.mxu0 0
    %795 = vmatprep.subr.bf16.mxu0 0
    %796 = vmatpush1.bf16.msra.mxu0 0
    %797 = vmatprep.subr.bf16.mxu0 0
    %798 = vmatpush1.bf16.msra.mxu0 0
    %799 = vmatprep.subr.bf16.mxu0 0
    %800 = vmatpush1.bf16.msra.mxu0 0
    %801 = vmatprep.mubr.bf16.mxu0 0
    %802 = vmatmul.mubr.bf16.gmra.mrb[0].mxu0 %v766
    %v803 = vpop.f32.mrb[0].mxu0
    %v804 = vadd.f32 %v767, %v803
    %v805 = vpop.f32.mrb[0].mxu0
    %v806 = vpop.f32.mrb[0].mxu0
    %v807 = vpop.f32.mrb[0].mxu0
    %808 = vdwg.mxu0
    %v809 = vtanh.pop %v804
    %v810 = vsel %vm764, %v809, %v718
    %v811 = vpack.c.bf16 %v810, %v810
    %v813 = vlaneseq
    %v814 = vshrl.u32 %v813, 7
    %v815 = vsub.s32 0, %v814
    %v816 = vrot.slane %v141, %v815
    %v834 = vunpack.c.l.b16 %v125
    %v835 = vunpack.c.l.b16 %v126
    %v836 = vunpack.c.l.b16 %v127
    %v837 = vunpack.c.l.b16 %v128
    %v838 = vunpack.c.l.b16 %v129
    %v839 = vunpack.c.l.b16 %v130
    %v840 = vunpack.c.l.b16 %v131
    %v841 = vunpack.c.l.b16 %v132
    %v842 = vunpack.c.l.b16 %v133
    %v843 = vunpack.c.l.b16 %v134
    %v844 = vunpack.c.l.b16 %v135
    %v845 = vunpack.c.l.b16 %v136
    %v846 = vunpack.c.l.b16 %v137
    %v847 = vunpack.c.l.b16 %v138
    %v848 = vunpack.c.l.b16 %v139
    %v849 = vunpack.c.l.b16 %v140
    %v850 = vpack.c.b16 %v835, %v834
    %v851 = vpack.c.b16 %v837, %v836
    %v852 = vpack.c.b16 %v839, %v838
    %v853 = vpack.c.b16 %v841, %v840
    %v854 = vpack.c.b16 %v843, %v842
    %v855 = vpack.c.b16 %v845, %v844
    %v856 = vpack.c.b16 %v847, %v846
    %v857 = vpack.c.b16 %v849, %v848
    %866 = vmatprep.subr.bf16.mxu0 0
    %867 = vmatpush1.bf16.msra.mxu0 %v850
    %868 = vmatprep.subr.bf16.mxu0 0
    %869 = vmatpush1.bf16.msra.mxu0 %v851
    %870 = vmatprep.subr.bf16.mxu0 0
    %871 = vmatpush1.bf16.msra.mxu0 %v852
    %872 = vmatprep.subr.bf16.mxu0 0
    %873 = vmatpush1.bf16.msra.mxu0 %v853
    %874 = vmatprep.subr.bf16.mxu0 0
    %875 = vmatpush1.bf16.msra.mxu0 %v854
    %876 = vmatprep.subr.bf16.mxu0 0
    %877 = vmatpush1.bf16.msra.mxu0 %v855
    %878 = vmatprep.subr.bf16.mxu0 0
    %879 = vmatpush1.bf16.msra.mxu0 %v856
    %880 = vmatprep.subr.bf16.mxu0 0
    %881 = vmatpush1.bf16.msra.mxu0 %v857
    %882 = vmatprep.subr.bf16.mxu0 0
    %883 = vmatpush1.bf16.msra.mxu0 0
    %884 = vmatprep.subr.bf16.mxu0 0
    %885 = vmatpush1.bf16.msra.mxu0 0
    %886 = vmatprep.subr.bf16.mxu0 0
    %887 = vmatpush1.bf16.msra.mxu0 0
    %888 = vmatprep.subr.bf16.mxu0 0
    %889 = vmatpush1.bf16.msra.mxu0 0
    %890 = vmatprep.subr.bf16.mxu0 0
    %891 = vmatpush1.bf16.msra.mxu0 0
    %892 = vmatprep.subr.bf16.mxu0 0
    %893 = vmatpush1.bf16.msra.mxu0 0
    %894 = vmatprep.subr.bf16.mxu0 0
    %895 = vmatpush1.bf16.msra.mxu0 0
    %896 = vmatprep.subr.bf16.mxu0 0
    %897 = vmatpush1.bf16.msra.mxu0 0
    %898 = vmatprep.mubr.bf16.mxu0 0
    %899 = vmatmul.mubr.bf16.gmra.mrb[0].mxu0 %v811
    %v900 = vpop.f32.mrb[0].mxu0
    %v901 = vadd.f32 %v816, %v900
    %v902 = vpop.f32.mrb[0].mxu0
    %v903 = vpop.f32.mrb[0].mxu0
    %v904 = vpop.f32.mrb[0].mxu0
    %905 = vdwg.mxu0
    %vm906 = vcmask 1041408
    %v907 = vsel %vm906, %v901, -inf
    %908 = vmax.xlane.f32.xlu0 %v907
    %v909 = vpop.xlane.xlu0 %908
    %v910 = vsub.f32 %v901, %v909
    %v911 = vmul.f32 %v910, 1.442695
    %v912 = vpow.pop %v911
    %v913 = vsel %vm906, %v912, 0.0
    %914 = vadd.xlane.f32.xlu0 %v913
    %v915 = vpop.xlane.xlu0 %914
    %v916 = vlog2.pop %v915
    %v917 = vmul.f32 %v916, 0.6931472
    %v918 = vadd.f32 %v917, %v909
    %v919 = vsub.f32 %v901, %v918
    %920 = vst [vmem:[#allocation12] sm:$0x3] %v919
    // Predicated region
    $region50: #{tpu_custom_call.1} parent=1 // pred_check
      _
    $region51: #{tpu_custom_call.1} parent=1 // pred_check_branch
      %922 = sbr.rel (0) target = $region53
    $region52: #{tpu_custom_call.1} parent=1 // pred_region
      %s924 = ssub.s32 32, 32
      %925 = vsyncadd [#allocation4], %s924
      %s927 = sshll.u32 [#allocation12], 4
      %s928 = int_to_ptr.vmem [resolvable:$true] %s927
      %930 = dma.vmem_to_hbm [thread:$0]  %s928, 32, %s7, [#allocation4]
    $region53: #{tpu_custom_call.1} parent=1 // pred_fallthru
      _
    // Predicated region
    $region54: #{tpu_custom_call.1} parent=1 // pred_check
      _
    $region55: #{tpu_custom_call.1} parent=1 // pred_check_branch
      %932 = sbr.rel (0) target = $region57
    $region56: #{tpu_custom_call.1} parent=1 // pred_region
      %933 = dma.done [#allocation4], 32
    $region57: #{tpu_custom_call.1} parent=1 // pred_fallthru
      _
    %934 = vsyncpa [#allocation3], 1
    %935 = vsyncpa [#allocation10], 1
    %936 = vsyncpa [#allocation4], 1
    %937 = vsyncpa [#allocation5], 1
    %938 = vsyncpa [#allocation6], 1

</llo_original>
